<compile_context>
chip_gen: v7x
topology: tpu7x:2x2x1
jax: 0.10.0
libtpu: 0.0.40
codegen_flags: <defaults>
</compile_context>

<pallas_src>
import functools

import jax
import jax.numpy as jnp
from jax.experimental import pallas as pl
from jax.experimental.pallas import tpu as pltpu


def _rf_forest_kernel(x_ref, w_ref, thr_ref, leavesT_ref, out_ref,
                      *, n_trees, depth, chunk):
    """One grid step: evaluate every tree for one tile of samples.

    x_ref:       (N, F)      f32 samples
    w_ref:       (F, D*T)    f32 one-hot feature selectors, depth-major cols
    thr_ref:     (1, D*T)    f32 thresholds, depth-major cols
    leavesT_ref: (L, T)      f32 leaf values (leaf-major rows)
    out_ref:     (N, 1)      f32 forest mean prediction
    """
    x = x_ref[...]                                            # (N, F)

    # One lane-dense MXU matmul selects the split-feature value for every
    # (depth, tree) pair at once: (N, F) @ (F, D*T) -> (N, D*T).  Exact in
    # f32 (each W column is x[f] * 1.0), so the compare matches the reference.
    proj = jnp.dot(x, w_ref[...], preferred_element_type=jnp.float32)
    bits = proj > thr_ref[...]                                # (N, D*T) bool masks

    n = x.shape[0]
    t = n_trees
    n_leaves = 1 << depth

    # Binary select tree over the depth bits, evaluated depth-first on
    # `chunk`-lane (lane-aligned) slabs of the tree axis:
    # 2**depth - 1 = 15 vselects per slab, no int cast / index arithmetic,
    # and only ~depth live (N, chunk) temporaries at any point (no spill).
    acc = jnp.zeros((n, 1), jnp.float32)
    for c0 in range(0, t, chunk):
        # Static, lane-aligned slices (chunk % 128 == 0, offsets % 128 == 0).
        masks = [bits[:, d * t + c0: d * t + c0 + chunk] for d in range(depth)]
        lv = leavesT_ref[:, c0:c0 + chunk]                    # (L, chunk)

        def gather(lo, size):
            # Returns the selected leaf value for leaf range [lo, lo+size).
            if size == 1:
                return lv[lo:lo + 1, :]                       # (1, chunk)
            half = size // 2
            left = gather(lo, half)                           # splitting bit == 0
            right = gather(lo + half, half)                   # splitting bit == 1
            return jnp.where(masks[size.bit_length() - 2], right, left)

        pred_c = gather(0, n_leaves)                          # (N, chunk)
        acc = acc + jnp.sum(pred_c, axis=1, keepdims=True)

    # Forest prediction = mean over trees; single store of the output tile.
    out_ref[...] = acc * (1.0 / t)


def pack_forest_params(w, thr, leaves):
    """One-time layout packing for the kernel (hoisted out of the predict path).

    w: (T, F, D); thr: (T, 1, D); leaves: (T, 1, L)
    -> w_flat (F, D*T), thr_flat (1, D*T), leaves_t (L, T), all depth-major
       so the kernel uses one wide matmul and static lane-aligned slices.
    """
    t, f, d = w.shape
    w_flat = jnp.transpose(w, (1, 2, 0)).reshape(f, d * t)             # (F, D*T)
    thr_flat = jnp.transpose(thr[:, 0, :], (1, 0)).reshape(1, d * t)   # (1, D*T)
    leaves_t = jnp.transpose(leaves[:, 0, :], (1, 0))                  # (L, T)
    return w_flat, thr_flat, leaves_t


@jax.jit
def rf_forest_predict(x, w_flat, thr_flat, leaves_t):
    """x: (N, F); packed forest params from pack_forest_params -> (N,) f32."""
    n, f = x.shape
    l, t = leaves_t.shape
    d = w_flat.shape[1] // t

    tile_n = n if n <= 256 else 256            # sample tile (v5e: 128 also fine)
    chunk = 256 if (t % 256 == 0) else t       # tree-axis slab for the select tree

    kernel = functools.partial(
        _rf_forest_kernel, n_trees=t, depth=d, chunk=chunk)

    out = pl.pallas_call(
        kernel,
        out_shape=jax.ShapeDtypeStruct((n, 1), jnp.float32),
        grid_spec=pltpu.PrefetchScalarGridSpec(
            num_scalar_prefetch=0,
            grid=(pl.cdiv(n, tile_n),),                        # sample tiles
            in_specs=[
                pl.BlockSpec((tile_n, f), lambda i: (i, 0)),   # x
                pl.BlockSpec((f, d * t), lambda i: (0, 0)),    # W      (~64 KiB)
                pl.BlockSpec((1, d * t), lambda i: (0, 0)),    # thr    (~8 KiB)
                pl.BlockSpec((l, t), lambda i: (0, 0)),        # leaves (~32 KiB)
            ],
            out_specs=pl.BlockSpec((tile_n, 1), lambda i: (i, 0)),
        ),
        compiler_params=pltpu.CompilerParams(
            dimension_semantics=("parallel",),                 # v7x: shard tiles over TCs
        ),
    )(x, w_flat, thr_flat, leaves_t)
    return out[:, 0]                                           # fused into the jit


def rf_forest_predict_ref(x, w, thr, leaves):
    """Pure-JAX reference for correctness check (original parameter layout)."""
    proj = jnp.einsum("nf,tfd->ntd", x, w)                        # (N, T, D)
    bits = (proj > thr[None, :, 0, :]).astype(jnp.float32)        # (N, T, D)
    d = w.shape[-1]
    powers = 2.0 ** jnp.arange(d, dtype=jnp.float32)
    idx = jnp.sum(bits * powers, axis=-1).astype(jnp.int32)       # (N, T)
    leaves2 = leaves[:, 0, :]                                     # (T, L)
    per_tree = jnp.take_along_axis(
        jnp.broadcast_to(leaves2[None], (x.shape[0],) + leaves2.shape),
        idx[..., None], axis=-1)[..., 0]                          # (N, T)
    return jnp.mean(per_tree, axis=-1)


def make_forest_params(key, n_estimators, n_features, depth):
    """Deterministic synthetic oblivious-tree forest (original layout)."""
    k1, k2, k3 = jax.random.split(key, 3)
    feat_idx = jax.random.randint(k1, (n_estimators, depth), 0, n_features)
    w = jax.nn.one_hot(feat_idx, n_features, axis=1, dtype=jnp.float32)  # (T,F,D)
    thr = jax.random.normal(k2, (n_estimators, 1, depth), jnp.float32)
    leaves = jax.random.normal(k3, (n_estimators, 1, 2 ** depth), jnp.float32)
    return w, thr, leaves


if __name__ == "__main__":
    N_ESTIMATORS = 512   # module default
    DEPTH = 4            # max_depth=None mapped to fixed synthetic depth
    N_SAMPLES = 16
    N_FEATURES = 8

    key = jax.random.PRNGKey(0)
    kx, kp = jax.random.split(key)
    x = jax.random.normal(kx, (N_SAMPLES, N_FEATURES), jnp.float32)
    w, thr, leaves = make_forest_params(kp, N_ESTIMATORS, N_FEATURES, DEPTH)

    # One-time layout packing (NOT part of the per-call predict path).
    w_flat, thr_flat, leaves_t = pack_forest_params(w, thr, leaves)
    w_flat, thr_flat, leaves_t = jax.block_until_ready(
        (w_flat, thr_flat, leaves_t))

    pred = jax.block_until_ready(rf_forest_predict(x, w_flat, thr_flat, leaves_t))
    ref = jax.block_until_ready(rf_forest_predict_ref(x, w, thr, leaves))

    assert pred.shape == (N_SAMPLES,)
    assert jnp.allclose(pred, ref, atol=1e-5, rtol=1e-5), (pred, ref)

    print("KERNEL_OK")
</pallas_src>

<mosaic_0001>
module attributes {stable_mosaic.version = 11 : i64} {
  func.func @_rf_forest_kernel(%arg0: i32, %arg1: memref<16x8xf32, #tpu.memory_space<vmem>>, %arg2: memref<8x2048xf32, #tpu.memory_space<vmem>>, %arg3: memref<1x2048xf32, #tpu.memory_space<vmem>>, %arg4: memref<16x512xf32, #tpu.memory_space<vmem>>, %arg5: memref<16x1xf32, #tpu.memory_space<vmem>>) attributes {dimension_semantics = [#tpu.dimension_semantics<parallel>], iteration_bounds = array<i64: 1>, scalar_prefetch = 0 : i64, scratch_operands = 0 : i64, tpu.core_type = #tpu.core_type<tc>, window_params = [{transform_indices = @transform_0, window_bounds = array<i64: 16, 8>}, {pipeline_mode = #tpu.pipeline_mode<synchronous>, transform_indices = @transform_1, window_bounds = array<i64: 8, 2048>}, {pipeline_mode = #tpu.pipeline_mode<synchronous>, transform_indices = @transform_2, window_bounds = array<i64: 1, 2048>}, {pipeline_mode = #tpu.pipeline_mode<synchronous>, transform_indices = @transform_3, window_bounds = array<i64: 16, 512>}, {transform_indices = @transform_4, window_bounds = array<i64: 16, 1>}]} {
    %c0 = arith.constant 0 : index
    %c0_0 = arith.constant 0 : index
    %0 = vector.load %arg1[%c0, %c0_0] : memref<16x8xf32, #tpu.memory_space<vmem>>, vector<16x8xf32>
    %c0_1 = arith.constant 0 : index
    %c0_2 = arith.constant 0 : index
    %1 = vector.load %arg2[%c0_1, %c0_2] : memref<8x2048xf32, #tpu.memory_space<vmem>>, vector<8x2048xf32>
    %cst = arith.constant dense<0.000000e+00> : vector<16x2048xf32>
    %2 = tpu.matmul %0, %1, %cst {dimension_numbers = #tpu.dot_dimension_numbers<[1], [0], [0], [1], [0, 0, 1, 1], [], []>} : vector<16x8xf32>, vector<8x2048xf32>, vector<16x2048xf32> -> vector<16x2048xf32>
    %c0_3 = arith.constant 0 : index
    %c0_4 = arith.constant 0 : index
    %3 = vector.load %arg3[%c0_3, %c0_4] : memref<1x2048xf32, #tpu.memory_space<vmem>>, vector<1x2048xf32>
    %4 = vector.broadcast %3 : vector<1x2048xf32> to vector<16x2048xf32>
    %5 = arith.cmpf ogt, %2, %4 : vector<16x2048xf32>
    %cst_5 = arith.constant 0.000000e+00 : f32
    %6 = vector.broadcast %cst_5 : f32 to vector<16x1xf32>
    %7 = vector.extract_strided_slice %5 {offsets = [0, 0], sizes = [16, 256], strides = [1, 1]} : vector<16x2048xi1> to vector<16x256xi1>
    %8 = vector.extract_strided_slice %5 {offsets = [0, 512], sizes = [16, 256], strides = [1, 1]} : vector<16x2048xi1> to vector<16x256xi1>
    %9 = vector.extract_strided_slice %5 {offsets = [0, 1024], sizes = [16, 256], strides = [1, 1]} : vector<16x2048xi1> to vector<16x256xi1>
    %10 = vector.extract_strided_slice %5 {offsets = [0, 1536], sizes = [16, 256], strides = [1, 1]} : vector<16x2048xi1> to vector<16x256xi1>
    %c0_6 = arith.constant 0 : index
    %c0_7 = arith.constant 0 : index
    %11 = vector.load %arg4[%c0_6, %c0_7] : memref<16x512xf32, #tpu.memory_space<vmem>>, vector<16x256xf32>
    %12 = vector.extract_strided_slice %11 {offsets = [0, 0], sizes = [1, 256], strides = [1, 1]} : vector<16x256xf32> to vector<1x256xf32>
    %13 = vector.extract_strided_slice %11 {offsets = [1, 0], sizes = [1, 256], strides = [1, 1]} : vector<16x256xf32> to vector<1x256xf32>
    %14 = vector.shape_cast %13 : vector<1x256xf32> to vector<1x256xf32>
    %15 = vector.broadcast %14 : vector<1x256xf32> to vector<16x256xf32>
    %16 = vector.shape_cast %12 : vector<1x256xf32> to vector<1x256xf32>
    %17 = vector.broadcast %16 : vector<1x256xf32> to vector<16x256xf32>
    %18 = arith.select %7, %15, %17 : vector<16x256xi1>, vector<16x256xf32>
    %19 = vector.extract_strided_slice %11 {offsets = [2, 0], sizes = [1, 256], strides = [1, 1]} : vector<16x256xf32> to vector<1x256xf32>
    %20 = vector.extract_strided_slice %11 {offsets = [3, 0], sizes = [1, 256], strides = [1, 1]} : vector<16x256xf32> to vector<1x256xf32>
    %21 = vector.shape_cast %20 : vector<1x256xf32> to vector<1x256xf32>
    %22 = vector.broadcast %21 : vector<1x256xf32> to vector<16x256xf32>
    %23 = vector.shape_cast %19 : vector<1x256xf32> to vector<1x256xf32>
    %24 = vector.broadcast %23 : vector<1x256xf32> to vector<16x256xf32>
    %25 = arith.select %7, %22, %24 : vector<16x256xi1>, vector<16x256xf32>
    %26 = arith.select %8, %25, %18 : vector<16x256xi1>, vector<16x256xf32>
    %27 = vector.extract_strided_slice %11 {offsets = [4, 0], sizes = [1, 256], strides = [1, 1]} : vector<16x256xf32> to vector<1x256xf32>
    %28 = vector.extract_strided_slice %11 {offsets = [5, 0], sizes = [1, 256], strides = [1, 1]} : vector<16x256xf32> to vector<1x256xf32>
    %29 = vector.shape_cast %28 : vector<1x256xf32> to vector<1x256xf32>
    %30 = vector.broadcast %29 : vector<1x256xf32> to vector<16x256xf32>
    %31 = vector.shape_cast %27 : vector<1x256xf32> to vector<1x256xf32>
    %32 = vector.broadcast %31 : vector<1x256xf32> to vector<16x256xf32>
    %33 = arith.select %7, %30, %32 : vector<16x256xi1>, vector<16x256xf32>
    %34 = vector.extract_strided_slice %11 {offsets = [6, 0], sizes = [1, 256], strides = [1, 1]} : vector<16x256xf32> to vector<1x256xf32>
    %35 = vector.extract_strided_slice %11 {offsets = [7, 0], sizes = [1, 256], strides = [1, 1]} : vector<16x256xf32> to vector<1x256xf32>
    %36 = vector.shape_cast %35 : vector<1x256xf32> to vector<1x256xf32>
    %37 = vector.broadcast %36 : vector<1x256xf32> to vector<16x256xf32>
    %38 = vector.shape_cast %34 : vector<1x256xf32> to vector<1x256xf32>
    %39 = vector.broadcast %38 : vector<1x256xf32> to vector<16x256xf32>
    %40 = arith.select %7, %37, %39 : vector<16x256xi1>, vector<16x256xf32>
    %41 = arith.select %8, %40, %33 : vector<16x256xi1>, vector<16x256xf32>
    %42 = arith.select %9, %41, %26 : vector<16x256xi1>, vector<16x256xf32>
    %43 = vector.extract_strided_slice %11 {offsets = [8, 0], sizes = [1, 256], strides = [1, 1]} : vector<16x256xf32> to vector<1x256xf32>
    %44 = vector.extract_strided_slice %11 {offsets = [9, 0], sizes = [1, 256], strides = [1, 1]} : vector<16x256xf32> to vector<1x256xf32>
    %45 = vector.shape_cast %44 : vector<1x256xf32> to vector<1x256xf32>
    %46 = vector.broadcast %45 : vector<1x256xf32> to vector<16x256xf32>
    %47 = vector.shape_cast %43 : vector<1x256xf32> to vector<1x256xf32>
    %48 = vector.broadcast %47 : vector<1x256xf32> to vector<16x256xf32>
    %49 = arith.select %7, %46, %48 : vector<16x256xi1>, vector<16x256xf32>
    %50 = vector.extract_strided_slice %11 {offsets = [10, 0], sizes = [1, 256], strides = [1, 1]} : vector<16x256xf32> to vector<1x256xf32>
    %51 = vector.extract_strided_slice %11 {offsets = [11, 0], sizes = [1, 256], strides = [1, 1]} : vector<16x256xf32> to vector<1x256xf32>
    %52 = vector.shape_cast %51 : vector<1x256xf32> to vector<1x256xf32>
    %53 = vector.broadcast %52 : vector<1x256xf32> to vector<16x256xf32>
    %54 = vector.shape_cast %50 : vector<1x256xf32> to vector<1x256xf32>
    %55 = vector.broadcast %54 : vector<1x256xf32> to vector<16x256xf32>
    %56 = arith.select %7, %53, %55 : vector<16x256xi1>, vector<16x256xf32>
    %57 = arith.select %8, %56, %49 : vector<16x256xi1>, vector<16x256xf32>
    %58 = vector.extract_strided_slice %11 {offsets = [12, 0], sizes = [1, 256], strides = [1, 1]} : vector<16x256xf32> to vector<1x256xf32>
    %59 = vector.extract_strided_slice %11 {offsets = [13, 0], sizes = [1, 256], strides = [1, 1]} : vector<16x256xf32> to vector<1x256xf32>
    %60 = vector.shape_cast %59 : vector<1x256xf32> to vector<1x256xf32>
    %61 = vector.broadcast %60 : vector<1x256xf32> to vector<16x256xf32>
    %62 = vector.shape_cast %58 : vector<1x256xf32> to vector<1x256xf32>
    %63 = vector.broadcast %62 : vector<1x256xf32> to vector<16x256xf32>
    %64 = arith.select %7, %61, %63 : vector<16x256xi1>, vector<16x256xf32>
    %65 = vector.extract_strided_slice %11 {offsets = [14, 0], sizes = [1, 256], strides = [1, 1]} : vector<16x256xf32> to vector<1x256xf32>
    %66 = vector.extract_strided_slice %11 {offsets = [15, 0], sizes = [1, 256], strides = [1, 1]} : vector<16x256xf32> to vector<1x256xf32>
    %67 = vector.shape_cast %66 : vector<1x256xf32> to vector<1x256xf32>
    %68 = vector.broadcast %67 : vector<1x256xf32> to vector<16x256xf32>
    %69 = vector.shape_cast %65 : vector<1x256xf32> to vector<1x256xf32>
    %70 = vector.broadcast %69 : vector<1x256xf32> to vector<16x256xf32>
    %71 = arith.select %7, %68, %70 : vector<16x256xi1>, vector<16x256xf32>
    %72 = arith.select %8, %71, %64 : vector<16x256xi1>, vector<16x256xf32>
    %73 = arith.select %9, %72, %57 : vector<16x256xi1>, vector<16x256xf32>
    %74 = arith.select %10, %73, %42 : vector<16x256xi1>, vector<16x256xf32>
    %cst_8 = arith.constant dense<0.000000e+00> : vector<16xf32>
    %75 = vector.multi_reduction <add>, %74, %cst_8 [1] : vector<16x256xf32> to vector<16xf32>
    %76 = vector.shape_cast %75 : vector<16xf32> to vector<16x1xf32>
    %77 = arith.addf %6, %76 : vector<16x1xf32>
    %78 = vector.extract_strided_slice %5 {offsets = [0, 256], sizes = [16, 256], strides = [1, 1]} : vector<16x2048xi1> to vector<16x256xi1>
    %79 = vector.extract_strided_slice %5 {offsets = [0, 768], sizes = [16, 256], strides = [1, 1]} : vector<16x2048xi1> to vector<16x256xi1>
    %80 = vector.extract_strided_slice %5 {offsets = [0, 1280], sizes = [16, 256], strides = [1, 1]} : vector<16x2048xi1> to vector<16x256xi1>
    %81 = vector.extract_strided_slice %5 {offsets = [0, 1792], sizes = [16, 256], strides = [1, 1]} : vector<16x2048xi1> to vector<16x256xi1>
    %c0_9 = arith.constant 0 : index
    %c256 = arith.constant 256 : index
    %82 = vector.load %arg4[%c0_9, %c256] : memref<16x512xf32, #tpu.memory_space<vmem>>, vector<16x256xf32>
    %83 = vector.extract_strided_slice %82 {offsets = [0, 0], sizes = [1, 256], strides = [1, 1]} : vector<16x256xf32> to vector<1x256xf32>
    %84 = vector.extract_strided_slice %82 {offsets = [1, 0], sizes = [1, 256], strides = [1, 1]} : vector<16x256xf32> to vector<1x256xf32>
    %85 = vector.shape_cast %84 : vector<1x256xf32> to vector<1x256xf32>
    %86 = vector.broadcast %85 : vector<1x256xf32> to vector<16x256xf32>
    %87 = vector.shape_cast %83 : vector<1x256xf32> to vector<1x256xf32>
    %88 = vector.broadcast %87 : vector<1x256xf32> to vector<16x256xf32>
    %89 = arith.select %78, %86, %88 : vector<16x256xi1>, vector<16x256xf32>
    %90 = vector.extract_strided_slice %82 {offsets = [2, 0], sizes = [1, 256], strides = [1, 1]} : vector<16x256xf32> to vector<1x256xf32>
    %91 = vector.extract_strided_slice %82 {offsets = [3, 0], sizes = [1, 256], strides = [1, 1]} : vector<16x256xf32> to vector<1x256xf32>
    %92 = vector.shape_cast %91 : vector<1x256xf32> to vector<1x256xf32>
    %93 = vector.broadcast %92 : vector<1x256xf32> to vector<16x256xf32>
    %94 = vector.shape_cast %90 : vector<1x256xf32> to vector<1x256xf32>
    %95 = vector.broadcast %94 : vector<1x256xf32> to vector<16x256xf32>
    %96 = arith.select %78, %93, %95 : vector<16x256xi1>, vector<16x256xf32>
    %97 = arith.select %79, %96, %89 : vector<16x256xi1>, vector<16x256xf32>
    %98 = vector.extract_strided_slice %82 {offsets = [4, 0], sizes = [1, 256], strides = [1, 1]} : vector<16x256xf32> to vector<1x256xf32>
    %99 = vector.extract_strided_slice %82 {offsets = [5, 0], sizes = [1, 256], strides = [1, 1]} : vector<16x256xf32> to vector<1x256xf32>
    %100 = vector.shape_cast %99 : vector<1x256xf32> to vector<1x256xf32>
    %101 = vector.broadcast %100 : vector<1x256xf32> to vector<16x256xf32>
    %102 = vector.shape_cast %98 : vector<1x256xf32> to vector<1x256xf32>
    %103 = vector.broadcast %102 : vector<1x256xf32> to vector<16x256xf32>
    %104 = arith.select %78, %101, %103 : vector<16x256xi1>, vector<16x256xf32>
    %105 = vector.extract_strided_slice %82 {offsets = [6, 0], sizes = [1, 256], strides = [1, 1]} : vector<16x256xf32> to vector<1x256xf32>
    %106 = vector.extract_strided_slice %82 {offsets = [7, 0], sizes = [1, 256], strides = [1, 1]} : vector<16x256xf32> to vector<1x256xf32>
    %107 = vector.shape_cast %106 : vector<1x256xf32> to vector<1x256xf32>
    %108 = vector.broadcast %107 : vector<1x256xf32> to vector<16x256xf32>
    %109 = vector.shape_cast %105 : vector<1x256xf32> to vector<1x256xf32>
    %110 = vector.broadcast %109 : vector<1x256xf32> to vector<16x256xf32>
    %111 = arith.select %78, %108, %110 : vector<16x256xi1>, vector<16x256xf32>
    %112 = arith.select %79, %111, %104 : vector<16x256xi1>, vector<16x256xf32>
    %113 = arith.select %80, %112, %97 : vector<16x256xi1>, vector<16x256xf32>
    %114 = vector.extract_strided_slice %82 {offsets = [8, 0], sizes = [1, 256], strides = [1, 1]} : vector<16x256xf32> to vector<1x256xf32>
    %115 = vector.extract_strided_slice %82 {offsets = [9, 0], sizes = [1, 256], strides = [1, 1]} : vector<16x256xf32> to vector<1x256xf32>
    %116 = vector.shape_cast %115 : vector<1x256xf32> to vector<1x256xf32>
    %117 = vector.broadcast %116 : vector<1x256xf32> to vector<16x256xf32>
    %118 = vector.shape_cast %114 : vector<1x256xf32> to vector<1x256xf32>
    %119 = vector.broadcast %118 : vector<1x256xf32> to vector<16x256xf32>
    %120 = arith.select %78, %117, %119 : vector<16x256xi1>, vector<16x256xf32>
    %121 = vector.extract_strided_slice %82 {offsets = [10, 0], sizes = [1, 256], strides = [1, 1]} : vector<16x256xf32> to vector<1x256xf32>
    %122 = vector.extract_strided_slice %82 {offsets = [11, 0], sizes = [1, 256], strides = [1, 1]} : vector<16x256xf32> to vector<1x256xf32>
    %123 = vector.shape_cast %122 : vector<1x256xf32> to vector<1x256xf32>
    %124 = vector.broadcast %123 : vector<1x256xf32> to vector<16x256xf32>
    %125 = vector.shape_cast %121 : vector<1x256xf32> to vector<1x256xf32>
    %126 = vector.broadcast %125 : vector<1x256xf32> to vector<16x256xf32>
    %127 = arith.select %78, %124, %126 : vector<16x256xi1>, vector<16x256xf32>
    %128 = arith.select %79, %127, %120 : vector<16x256xi1>, vector<16x256xf32>
    %129 = vector.extract_strided_slice %82 {offsets = [12, 0], sizes = [1, 256], strides = [1, 1]} : vector<16x256xf32> to vector<1x256xf32>
    %130 = vector.extract_strided_slice %82 {offsets = [13, 0], sizes = [1, 256], strides = [1, 1]} : vector<16x256xf32> to vector<1x256xf32>
    %131 = vector.shape_cast %130 : vector<1x256xf32> to vector<1x256xf32>
    %132 = vector.broadcast %131 : vector<1x256xf32> to vector<16x256xf32>
    %133 = vector.shape_cast %129 : vector<1x256xf32> to vector<1x256xf32>
    %134 = vector.broadcast %133 : vector<1x256xf32> to vector<16x256xf32>
    %135 = arith.select %78, %132, %134 : vector<16x256xi1>, vector<16x256xf32>
    %136 = vector.extract_strided_slice %82 {offsets = [14, 0], sizes = [1, 256], strides = [1, 1]} : vector<16x256xf32> to vector<1x256xf32>
    %137 = vector.extract_strided_slice %82 {offsets = [15, 0], sizes = [1, 256], strides = [1, 1]} : vector<16x256xf32> to vector<1x256xf32>
    %138 = vector.shape_cast %137 : vector<1x256xf32> to vector<1x256xf32>
    %139 = vector.broadcast %138 : vector<1x256xf32> to vector<16x256xf32>
    %140 = vector.shape_cast %136 : vector<1x256xf32> to vector<1x256xf32>
    %141 = vector.broadcast %140 : vector<1x256xf32> to vector<16x256xf32>
    %142 = arith.select %78, %139, %141 : vector<16x256xi1>, vector<16x256xf32>
    %143 = arith.select %79, %142, %135 : vector<16x256xi1>, vector<16x256xf32>
    %144 = arith.select %80, %143, %128 : vector<16x256xi1>, vector<16x256xf32>
    %145 = arith.select %81, %144, %113 : vector<16x256xi1>, vector<16x256xf32>
    %cst_10 = arith.constant dense<0.000000e+00> : vector<16xf32>
    %146 = vector.multi_reduction <add>, %145, %cst_10 [1] : vector<16x256xf32> to vector<16xf32>
    %147 = vector.shape_cast %146 : vector<16xf32> to vector<16x1xf32>
    %148 = arith.addf %77, %147 : vector<16x1xf32>
    %cst_11 = arith.constant 0.001953125 : f32
    %149 = vector.broadcast %cst_11 : f32 to vector<16x1xf32>
    %150 = arith.mulf %148, %149 : vector<16x1xf32>
    %c0_12 = arith.constant 0 : index
    %c0_13 = arith.constant 0 : index
    %151 = vector.load %arg5[%c0_12, %c0_13] : memref<16x1xf32, #tpu.memory_space<vmem>>, vector<16x1xf32>
    tpu.vector_store %arg5[%c0_12, %c0_13], %150 {strides = array<i32>} : memref<16x1xf32, #tpu.memory_space<vmem>>, vector<16x1xf32>,
    return
  }
  func.func @transform_0(%arg0: i32) -> (i32, i32) {
    %c0_i32 = arith.constant 0 : i32
    %c0_i32_0 = arith.constant 0 : i32
    return %arg0, %c0_i32 : i32, i32
  }
  func.func @transform_1(%arg0: i32) -> (i32, i32) {
    %c0_i32 = arith.constant 0 : i32
    %c0_i32_0 = arith.constant 0 : i32
    %c0_i32_1 = arith.constant 0 : i32
    return %c0_i32, %c0_i32_0 : i32, i32
  }
  func.func @transform_2(%arg0: i32) -> (i32, i32) {
    %c0_i32 = arith.constant 0 : i32
    %c0_i32_0 = arith.constant 0 : i32
    %c0_i32_1 = arith.constant 0 : i32
    return %c0_i32, %c0_i32_0 : i32, i32
  }
  func.func @transform_3(%arg0: i32) -> (i32, i32) {
    %c0_i32 = arith.constant 0 : i32
    %c0_i32_0 = arith.constant 0 : i32
    %c0_i32_1 = arith.constant 0 : i32
    return %c0_i32, %c0_i32_0 : i32, i32
  }
  func.func @transform_4(%arg0: i32) -> (i32, i32) {
    %c0_i32 = arith.constant 0 : i32
    %c0_i32_0 = arith.constant 0 : i32
    return %arg0, %c0_i32 : i32, i32
  }
}

</mosaic_0001>

<llo_original>
// kernel: rf_forest_predict.1
$region0: #{rf_forest_predict.1}
  #allocation0 [shape = 'u32[]', space=smem, size = 0x4, offset = 0x4, fixed_abs, tag = 'smem constant byte address 0x4 - core index']
  #allocation1 [shape = 'u32[144,128]{1,0:T(1,128)}', space=vmem, size = 0x12000, scoped, tag = 'internal scratch']
  %s0 = inlined_call_operand.vmem [shape: f32[16,8], index: 0, kind: input, shape index: {}]
  %s1 = inlined_call_operand.hbm [shape: f32[8,2048], index: 1, kind: input, shape index: {}]
  %s2 = inlined_call_operand.vmem [shape: f32[1,2048], index: 2, kind: input, shape index: {}]
  %s3 = inlined_call_operand.hbm [shape: f32[16,512], index: 3, kind: input, shape index: {}]
  %s4 = inlined_call_operand.vmem [shape: f32[16,1], index: 4, kind: output, shape index: {}]
  %s5 = sld [smem:[#allocation0]]
  $region34: #{rf_forest_predict.1} parent=0
    _
  %s7 = ssub.s32 1, %s5
  %s8 = scalar_select 0, %s7, %s5
  $region1: #{rf_forest_predict.1} parent=0
    #allocation2 [shape = 'u8[65536]{0}', space=vmem, size = 0x10000, scoped, tag = 'input window, operand 1, single buffered']
    #allocation3 [shape = 's32[1]{0}', space=sflag, size = 0x4, scoped, tag = 'scoped memory for rf_forest_predict.1']
    #allocation4 [shape = 'u8[32768]{0}', space=vmem, size = 0x8000, scoped, tag = 'input window, operand 3, single buffered']
    #allocation5 [shape = 's32[1]{0}', space=sflag, size = 0x4, scoped, tag = 'scoped memory for rf_forest_predict.1']
    %9 = vsyncpa [#allocation3], 0
    %10 = vsyncpa [#allocation5], 0
    // Predicated region
    $region2: #{rf_forest_predict.1} parent=1 // pred_check
      _
    $region3: #{rf_forest_predict.1} parent=1 // pred_check_branch
      %12 = sbr.rel (0) target = $region5
    $region4: #{rf_forest_predict.1} parent=1 // pred_region
      _
    $region5: #{rf_forest_predict.1} parent=1 // pred_fallthru
      _
    // Predicated region
    $region6: #{rf_forest_predict.1} parent=1 // pred_check
      _
    $region7: #{rf_forest_predict.1} parent=1 // pred_check_branch
      %14 = sbr.rel (0) target = $region9
    $region8: #{rf_forest_predict.1} parent=1 // pred_region
      %s16 = ssub.s32 2048, 2048
      %17 = vsyncadd [#allocation3], %s16
      %s19 = sshll.u32 [#allocation2], 4
      %s20 = int_to_ptr.vmem [resolvable:$true] %s19
      %22 = dma.hbm_to_vmem [thread:$0]  %s1, 2048, %s20, [#allocation3]
    $region9: #{rf_forest_predict.1} parent=1 // pred_fallthru
      _
    // Predicated region
    $region10: #{rf_forest_predict.1} parent=1 // pred_check
      _
    $region11: #{rf_forest_predict.1} parent=1 // pred_check_branch
      %24 = sbr.rel (0) target = $region13
    $region12: #{rf_forest_predict.1} parent=1 // pred_region
      _
    $region13: #{rf_forest_predict.1} parent=1 // pred_fallthru
      _
    // Predicated region
    $region14: #{rf_forest_predict.1} parent=1 // pred_check
      _
    $region15: #{rf_forest_predict.1} parent=1 // pred_check_branch
      %26 = sbr.rel (0) target = $region17
    $region16: #{rf_forest_predict.1} parent=1 // pred_region
      %s28 = ssub.s32 1024, 1024
      %29 = vsyncadd [#allocation5], %s28
      %s30 = sshll.u32 [#allocation4], 4
      %s31 = int_to_ptr.vmem [resolvable:$true] %s30
      %36 = dma.hbm_to_vmem [thread:$0]  %s3, 1024, %s31, [#allocation5], 512, 512, 32
    $region17: #{rf_forest_predict.1} parent=1 // pred_fallthru
      _
    // Predicated region
    $region18: #{rf_forest_predict.1} parent=1 // pred_check
      _
    $region19: #{rf_forest_predict.1} parent=1 // pred_check_branch
      %38 = sbr.rel (0) target = $region21
    $region20: #{rf_forest_predict.1} parent=1 // pred_region
      %39 = dma.done [#allocation3], 2048
    $region21: #{rf_forest_predict.1} parent=1 // pred_fallthru
      _
    // Predicated region
    $region22: #{rf_forest_predict.1} parent=1 // pred_check
      _
    $region23: #{rf_forest_predict.1} parent=1 // pred_check_branch
      %41 = sbr.rel (0) target = $region25
    $region24: #{rf_forest_predict.1} parent=1 // pred_region
      %42 = dma.done [#allocation5], 1024
    $region25: #{rf_forest_predict.1} parent=1 // pred_fallthru
      _
    %v43 = vld [vmem:[%s0] sm:$0xff]
    %v44 = vld [vmem:[%s0 + $0x8] sm:$0xff]
    %v45 = vld [vmem:[#allocation2] sm:$0xff]
    %v46 = vld [vmem:[#allocation2 + $0x8] sm:$0xff]
    %v47 = vld [vmem:[#allocation2 + $0x10] sm:$0xff]
    %v48 = vld [vmem:[#allocation2 + $0x18] sm:$0xff]
    %v49 = vld [vmem:[#allocation2 + $0x20] sm:$0xff]
    %v50 = vld [vmem:[#allocation2 + $0x28] sm:$0xff]
    %v51 = vld [vmem:[#allocation2 + $0x30] sm:$0xff]
    %v52 = vld [vmem:[#allocation2 + $0x38] sm:$0xff]
    %v53 = vld [vmem:[#allocation2 + $0x40] sm:$0xff]
    %v54 = vld [vmem:[#allocation2 + $0x48] sm:$0xff]
    %v55 = vld [vmem:[#allocation2 + $0x50] sm:$0xff]
    %v56 = vld [vmem:[#allocation2 + $0x58] sm:$0xff]
    %v57 = vld [vmem:[#allocation2 + $0x60] sm:$0xff]
    %v58 = vld [vmem:[#allocation2 + $0x68] sm:$0xff]
    %v59 = vld [vmem:[#allocation2 + $0x70] sm:$0xff]
    %v60 = vld [vmem:[#allocation2 + $0x78] sm:$0xff]
    %vm61 = vcmask 64512
    %v63 = vsel %vm61, %v43, 0
    %v66 = vsel %vm61, %v44, 0
    %68 = vmatprep.subr.mxu0 %v46
    %69 = vmatpush1.msra.mxu0 %v45
    %70 = vmatprep.subr.mxu0 0.0
    %71 = vmatpush1.msra.mxu0 0.0
    %72 = vmatprep.subr.mxu0 0.0
    %73 = vmatpush1.msra.mxu0 0.0
    %74 = vmatprep.subr.mxu0 0.0
    %75 = vmatpush1.msra.mxu0 0.0
    %76 = vmatprep.subr.mxu0 0.0
    %77 = vmatpush1.msra.mxu0 0.0
    %78 = vmatprep.subr.mxu0 0.0
    %79 = vmatpush1.msra.mxu0 0.0
    %80 = vmatprep.subr.mxu0 0.0
    %81 = vmatpush1.msra.mxu0 0.0
    %82 = vmatprep.subr.mxu0 0.0
    %83 = vmatpush1.msra.mxu0 0.0
    %84 = vmatprep.subr.mxu0 0.0
    %85 = vmatpush1.msra.mxu0 0.0
    %86 = vmatprep.subr.mxu0 0.0
    %87 = vmatpush1.msra.mxu0 0.0
    %88 = vmatprep.subr.mxu0 0.0
    %89 = vmatpush1.msra.mxu0 0.0
    %90 = vmatprep.subr.mxu0 0.0
    %91 = vmatpush1.msra.mxu0 0.0
    %92 = vmatprep.subr.mxu0 0.0
    %93 = vmatpush1.msra.mxu0 0.0
    %94 = vmatprep.subr.mxu0 0.0
    %95 = vmatpush1.msra.mxu0 0.0
    %96 = vmatprep.subr.mxu0 0.0
    %97 = vmatpush1.msra.mxu0 0.0
    %98 = vmatprep.subr.mxu0 0.0
    %99 = vmatpush1.msra.mxu0 0.0
    %100 = vmatprep.subr.mxu0 0.0
    %101 = vmatpush1.msra.mxu0 0.0
    %102 = vmatprep.subr.mxu0 0.0
    %103 = vmatpush1.msra.mxu0 0.0
    %104 = vmatprep.subr.mxu0 0.0
    %105 = vmatpush1.msra.mxu0 0.0
    %106 = vmatprep.subr.mxu0 0.0
    %107 = vmatpush1.msra.mxu0 0.0
    %108 = vmatprep.subr.mxu0 0.0
    %109 = vmatpush1.msra.mxu0 0.0
    %110 = vmatprep.subr.mxu0 0.0
    %111 = vmatpush1.msra.mxu0 0.0
    %112 = vmatprep.subr.mxu0 0.0
    %113 = vmatpush1.msra.mxu0 0.0
    %114 = vmatprep.subr.mxu0 0.0
    %115 = vmatpush1.msra.mxu0 0.0
    %116 = vmatprep.subr.mxu0 0.0
    %117 = vmatpush1.msra.mxu0 0.0
    %118 = vmatprep.subr.mxu0 0.0
    %119 = vmatpush1.msra.mxu0 0.0
    %120 = vmatprep.subr.mxu0 0.0
    %121 = vmatpush1.msra.mxu0 0.0
    %122 = vmatprep.subr.mxu0 0.0
    %123 = vmatpush1.msra.mxu0 0.0
    %124 = vmatprep.subr.mxu0 0.0
    %125 = vmatpush1.msra.mxu0 0.0
    %126 = vmatprep.subr.mxu0 0.0
    %127 = vmatpush1.msra.mxu0 0.0
    %128 = vmatprep.subr.mxu0 0.0
    %129 = vmatpush1.msra.mxu0 0.0
    %130 = vmatprep.subr.mxu0 0.0
    %131 = vmatpush1.msra.mxu0 0.0
    %132 = vmatprep.mubr.f32.mxu0 0.0
    %133 = vmatmul.mubr.f32.gmra.mrb[0].mxu0 %v63
    %v134 = vpop.f32.mrb[0].mxu0
    %v135 = vadd.f32 0.0, %v134
    %v136 = vpop.f32.mrb[0].mxu0
    %v137 = vadd.f32 0.0, %v136
    %138 = vmatprep.mubr.f32.mxu0 0.0
    %139 = vmatmul.mubr.f32.gmra.mrb[0].mxu0 %v66
    %v140 = vpop.f32.mrb[0].mxu0
    %v141 = vadd.f32 0.0, %v140
    %v142 = vpop.f32.mrb[0].mxu0
    %v143 = vadd.f32 0.0, %v142
    %144 = vdwg.mxu0
    %145 = vmatprep.subr.mxu0 %v48
    %146 = vmatpush1.msra.mxu0 %v47
    %147 = vmatprep.subr.mxu0 0.0
    %148 = vmatpush1.msra.mxu0 0.0
    %149 = vmatprep.subr.mxu0 0.0
    %150 = vmatpush1.msra.mxu0 0.0
    %151 = vmatprep.subr.mxu0 0.0
    %152 = vmatpush1.msra.mxu0 0.0
    %153 = vmatprep.subr.mxu0 0.0
    %154 = vmatpush1.msra.mxu0 0.0
    %155 = vmatprep.subr.mxu0 0.0
    %156 = vmatpush1.msra.mxu0 0.0
    %157 = vmatprep.subr.mxu0 0.0
    %158 = vmatpush1.msra.mxu0 0.0
    %159 = vmatprep.subr.mxu0 0.0
    %160 = vmatpush1.msra.mxu0 0.0
    %161 = vmatprep.subr.mxu0 0.0
    %162 = vmatpush1.msra.mxu0 0.0
    %163 = vmatprep.subr.mxu0 0.0
    %164 = vmatpush1.msra.mxu0 0.0
    %165 = vmatprep.subr.mxu0 0.0
    %166 = vmatpush1.msra.mxu0 0.0
    %167 = vmatprep.subr.mxu0 0.0
    %168 = vmatpush1.msra.mxu0 0.0
    %169 = vmatprep.subr.mxu0 0.0
    %170 = vmatpush1.msra.mxu0 0.0
    %171 = vmatprep.subr.mxu0 0.0
    %172 = vmatpush1.msra.mxu0 0.0
    %173 = vmatprep.subr.mxu0 0.0
    %174 = vmatpush1.msra.mxu0 0.0
    %175 = vmatprep.subr.mxu0 0.0
    %176 = vmatpush1.msra.mxu0 0.0
    %177 = vmatprep.subr.mxu0 0.0
    %178 = vmatpush1.msra.mxu0 0.0
    %179 = vmatprep.subr.mxu0 0.0
    %180 = vmatpush1.msra.mxu0 0.0
    %181 = vmatprep.subr.mxu0 0.0
    %182 = vmatpush1.msra.mxu0 0.0
    %183 = vmatprep.subr.mxu0 0.0
    %184 = vmatpush1.msra.mxu0 0.0
    %185 = vmatprep.subr.mxu0 0.0
    %186 = vmatpush1.msra.mxu0 0.0
    %187 = vmatprep.subr.mxu0 0.0
    %188 = vmatpush1.msra.mxu0 0.0
    %189 = vmatprep.subr.mxu0 0.0
    %190 = vmatpush1.msra.mxu0 0.0
    %191 = vmatprep.subr.mxu0 0.0
    %192 = vmatpush1.msra.mxu0 0.0
    %193 = vmatprep.subr.mxu0 0.0
    %194 = vmatpush1.msra.mxu0 0.0
    %195 = vmatprep.subr.mxu0 0.0
    %196 = vmatpush1.msra.mxu0 0.0
    %197 = vmatprep.subr.mxu0 0.0
    %198 = vmatpush1.msra.mxu0 0.0
    %199 = vmatprep.subr.mxu0 0.0
    %200 = vmatpush1.msra.mxu0 0.0
    %201 = vmatprep.subr.mxu0 0.0
    %202 = vmatpush1.msra.mxu0 0.0
    %203 = vmatprep.subr.mxu0 0.0
    %204 = vmatpush1.msra.mxu0 0.0
    %205 = vmatprep.subr.mxu0 0.0
    %206 = vmatpush1.msra.mxu0 0.0
    %207 = vmatprep.subr.mxu0 0.0
    %208 = vmatpush1.msra.mxu0 0.0
    %209 = vmatprep.mubr.f32.mxu0 0.0
    %210 = vmatmul.mubr.f32.gmra.mrb[0].mxu0 %v63
    %v211 = vpop.f32.mrb[0].mxu0
    %v212 = vadd.f32 0.0, %v211
    %v213 = vpop.f32.mrb[0].mxu0
    %v214 = vadd.f32 0.0, %v213
    %215 = vmatprep.mubr.f32.mxu0 0.0
    %216 = vmatmul.mubr.f32.gmra.mrb[0].mxu0 %v66
    %v217 = vpop.f32.mrb[0].mxu0
    %v218 = vadd.f32 0.0, %v217
    %v219 = vpop.f32.mrb[0].mxu0
    %v220 = vadd.f32 0.0, %v219
    %221 = vdwg.mxu0
    %222 = vmatprep.subr.mxu0 %v50
    %223 = vmatpush1.msra.mxu0 %v49
    %224 = vmatprep.subr.mxu0 0.0
    %225 = vmatpush1.msra.mxu0 0.0
    %226 = vmatprep.subr.mxu0 0.0
    %227 = vmatpush1.msra.mxu0 0.0
    %228 = vmatprep.subr.mxu0 0.0
    %229 = vmatpush1.msra.mxu0 0.0
    %230 = vmatprep.subr.mxu0 0.0
    %231 = vmatpush1.msra.mxu0 0.0
    %232 = vmatprep.subr.mxu0 0.0
    %233 = vmatpush1.msra.mxu0 0.0
    %234 = vmatprep.subr.mxu0 0.0
    %235 = vmatpush1.msra.mxu0 0.0
    %236 = vmatprep.subr.mxu0 0.0
    %237 = vmatpush1.msra.mxu0 0.0
    %238 = vmatprep.subr.mxu0 0.0
    %239 = vmatpush1.msra.mxu0 0.0
    %240 = vmatprep.subr.mxu0 0.0
    %241 = vmatpush1.msra.mxu0 0.0
    %242 = vmatprep.subr.mxu0 0.0
    %243 = vmatpush1.msra.mxu0 0.0
    %244 = vmatprep.subr.mxu0 0.0
    %245 = vmatpush1.msra.mxu0 0.0
    %246 = vmatprep.subr.mxu0 0.0
    %247 = vmatpush1.msra.mxu0 0.0
    %248 = vmatprep.subr.mxu0 0.0
    %249 = vmatpush1.msra.mxu0 0.0
    %250 = vmatprep.subr.mxu0 0.0
    %251 = vmatpush1.msra.mxu0 0.0
    %252 = vmatprep.subr.mxu0 0.0
    %253 = vmatpush1.msra.mxu0 0.0
    %254 = vmatprep.subr.mxu0 0.0
    %255 = vmatpush1.msra.mxu0 0.0
    %256 = vmatprep.subr.mxu0 0.0
    %257 = vmatpush1.msra.mxu0 0.0
    %258 = vmatprep.subr.mxu0 0.0
    %259 = vmatpush1.msra.mxu0 0.0
    %260 = vmatprep.subr.mxu0 0.0
    %261 = vmatpush1.msra.mxu0 0.0
    %262 = vmatprep.subr.mxu0 0.0
    %263 = vmatpush1.msra.mxu0 0.0
    %264 = vmatprep.subr.mxu0 0.0
    %265 = vmatpush1.msra.mxu0 0.0
    %266 = vmatprep.subr.mxu0 0.0
    %267 = vmatpush1.msra.mxu0 0.0
    %268 = vmatprep.subr.mxu0 0.0
    %269 = vmatpush1.msra.mxu0 0.0
    %270 = vmatprep.subr.mxu0 0.0
    %271 = vmatpush1.msra.mxu0 0.0
    %272 = vmatprep.subr.mxu0 0.0
    %273 = vmatpush1.msra.mxu0 0.0
    %274 = vmatprep.subr.mxu0 0.0
    %275 = vmatpush1.msra.mxu0 0.0
    %276 = vmatprep.subr.mxu0 0.0
    %277 = vmatpush1.msra.mxu0 0.0
    %278 = vmatprep.subr.mxu0 0.0
    %279 = vmatpush1.msra.mxu0 0.0
    %280 = vmatprep.subr.mxu0 0.0
    %281 = vmatpush1.msra.mxu0 0.0
    %282 = vmatprep.subr.mxu0 0.0
    %283 = vmatpush1.msra.mxu0 0.0
    %284 = vmatprep.subr.mxu0 0.0
    %285 = vmatpush1.msra.mxu0 0.0
    %286 = vmatprep.mubr.f32.mxu0 0.0
    %287 = vmatmul.mubr.f32.gmra.mrb[0].mxu0 %v63
    %v288 = vpop.f32.mrb[0].mxu0
    %v289 = vadd.f32 0.0, %v288
    %v290 = vpop.f32.mrb[0].mxu0
    %v291 = vadd.f32 0.0, %v290
    %292 = vmatprep.mubr.f32.mxu0 0.0
    %293 = vmatmul.mubr.f32.gmra.mrb[0].mxu0 %v66
    %v294 = vpop.f32.mrb[0].mxu0
    %v295 = vadd.f32 0.0, %v294
    %v296 = vpop.f32.mrb[0].mxu0
    %v297 = vadd.f32 0.0, %v296
    %298 = vdwg.mxu0
    %299 = vmatprep.subr.mxu0 %v52
    %300 = vmatpush1.msra.mxu0 %v51
    %301 = vmatprep.subr.mxu0 0.0
    %302 = vmatpush1.msra.mxu0 0.0
    %303 = vmatprep.subr.mxu0 0.0
    %304 = vmatpush1.msra.mxu0 0.0
    %305 = vmatprep.subr.mxu0 0.0
    %306 = vmatpush1.msra.mxu0 0.0
    %307 = vmatprep.subr.mxu0 0.0
    %308 = vmatpush1.msra.mxu0 0.0
    %309 = vmatprep.subr.mxu0 0.0
    %310 = vmatpush1.msra.mxu0 0.0
    %311 = vmatprep.subr.mxu0 0.0
    %312 = vmatpush1.msra.mxu0 0.0
    %313 = vmatprep.subr.mxu0 0.0
    %314 = vmatpush1.msra.mxu0 0.0
    %315 = vmatprep.subr.mxu0 0.0
    %316 = vmatpush1.msra.mxu0 0.0
    %317 = vmatprep.subr.mxu0 0.0
    %318 = vmatpush1.msra.mxu0 0.0
    %319 = vmatprep.subr.mxu0 0.0
    %320 = vmatpush1.msra.mxu0 0.0
    %321 = vmatprep.subr.mxu0 0.0
    %322 = vmatpush1.msra.mxu0 0.0
    %323 = vmatprep.subr.mxu0 0.0
    %324 = vmatpush1.msra.mxu0 0.0
    %325 = vmatprep.subr.mxu0 0.0
    %326 = vmatpush1.msra.mxu0 0.0
    %327 = vmatprep.subr.mxu0 0.0
    %328 = vmatpush1.msra.mxu0 0.0
    %329 = vmatprep.subr.mxu0 0.0
    %330 = vmatpush1.msra.mxu0 0.0
    %331 = vmatprep.subr.mxu0 0.0
    %332 = vmatpush1.msra.mxu0 0.0
    %333 = vmatprep.subr.mxu0 0.0
    %334 = vmatpush1.msra.mxu0 0.0
    %335 = vmatprep.subr.mxu0 0.0
    %336 = vmatpush1.msra.mxu0 0.0
    %337 = vmatprep.subr.mxu0 0.0
    %338 = vmatpush1.msra.mxu0 0.0
    %339 = vmatprep.subr.mxu0 0.0
    %340 = vmatpush1.msra.mxu0 0.0
    %341 = vmatprep.subr.mxu0 0.0
    %342 = vmatpush1.msra.mxu0 0.0
    %343 = vmatprep.subr.mxu0 0.0
    %344 = vmatpush1.msra.mxu0 0.0
    %345 = vmatprep.subr.mxu0 0.0
    %346 = vmatpush1.msra.mxu0 0.0
    %347 = vmatprep.subr.mxu0 0.0
    %348 = vmatpush1.msra.mxu0 0.0
    %349 = vmatprep.subr.mxu0 0.0
    %350 = vmatpush1.msra.mxu0 0.0
    %351 = vmatprep.subr.mxu0 0.0
    %352 = vmatpush1.msra.mxu0 0.0
    %353 = vmatprep.subr.mxu0 0.0
    %354 = vmatpush1.msra.mxu0 0.0
    %355 = vmatprep.subr.mxu0 0.0
    %356 = vmatpush1.msra.mxu0 0.0
    %357 = vmatprep.subr.mxu0 0.0
    %358 = vmatpush1.msra.mxu0 0.0
    %359 = vmatprep.subr.mxu0 0.0
    %360 = vmatpush1.msra.mxu0 0.0
    %361 = vmatprep.subr.mxu0 0.0
    %362 = vmatpush1.msra.mxu0 0.0
    %363 = vmatprep.mubr.f32.mxu0 0.0
    %364 = vmatmul.mubr.f32.gmra.mrb[0].mxu0 %v63
    %v365 = vpop.f32.mrb[0].mxu0
    %v366 = vadd.f32 0.0, %v365
    %v367 = vpop.f32.mrb[0].mxu0
    %v368 = vadd.f32 0.0, %v367
    %369 = vmatprep.mubr.f32.mxu0 0.0
    %370 = vmatmul.mubr.f32.gmra.mrb[0].mxu0 %v66
    %v371 = vpop.f32.mrb[0].mxu0
    %v372 = vadd.f32 0.0, %v371
    %v373 = vpop.f32.mrb[0].mxu0
    %v374 = vadd.f32 0.0, %v373
    %375 = vdwg.mxu0
    %376 = vmatprep.subr.mxu0 %v54
    %377 = vmatpush1.msra.mxu0 %v53
    %378 = vmatprep.subr.mxu0 0.0
    %379 = vmatpush1.msra.mxu0 0.0
    %380 = vmatprep.subr.mxu0 0.0
    %381 = vmatpush1.msra.mxu0 0.0
    %382 = vmatprep.subr.mxu0 0.0
    %383 = vmatpush1.msra.mxu0 0.0
    %384 = vmatprep.subr.mxu0 0.0
    %385 = vmatpush1.msra.mxu0 0.0
    %386 = vmatprep.subr.mxu0 0.0
    %387 = vmatpush1.msra.mxu0 0.0
    %388 = vmatprep.subr.mxu0 0.0
    %389 = vmatpush1.msra.mxu0 0.0
    %390 = vmatprep.subr.mxu0 0.0
    %391 = vmatpush1.msra.mxu0 0.0
    %392 = vmatprep.subr.mxu0 0.0
    %393 = vmatpush1.msra.mxu0 0.0
    %394 = vmatprep.subr.mxu0 0.0
    %395 = vmatpush1.msra.mxu0 0.0
    %396 = vmatprep.subr.mxu0 0.0
    %397 = vmatpush1.msra.mxu0 0.0
    %398 = vmatprep.subr.mxu0 0.0
    %399 = vmatpush1.msra.mxu0 0.0
    %400 = vmatprep.subr.mxu0 0.0
    %401 = vmatpush1.msra.mxu0 0.0
    %402 = vmatprep.subr.mxu0 0.0
    %403 = vmatpush1.msra.mxu0 0.0
    %404 = vmatprep.subr.mxu0 0.0
    %405 = vmatpush1.msra.mxu0 0.0
    %406 = vmatprep.subr.mxu0 0.0
    %407 = vmatpush1.msra.mxu0 0.0
    %408 = vmatprep.subr.mxu0 0.0
    %409 = vmatpush1.msra.mxu0 0.0
    %410 = vmatprep.subr.mxu0 0.0
    %411 = vmatpush1.msra.mxu0 0.0
    %412 = vmatprep.subr.mxu0 0.0
    %413 = vmatpush1.msra.mxu0 0.0
    %414 = vmatprep.subr.mxu0 0.0
    %415 = vmatpush1.msra.mxu0 0.0
    %416 = vmatprep.subr.mxu0 0.0
    %417 = vmatpush1.msra.mxu0 0.0
    %418 = vmatprep.subr.mxu0 0.0
    %419 = vmatpush1.msra.mxu0 0.0
    %420 = vmatprep.subr.mxu0 0.0
    %421 = vmatpush1.msra.mxu0 0.0
    %422 = vmatprep.subr.mxu0 0.0
    %423 = vmatpush1.msra.mxu0 0.0
    %424 = vmatprep.subr.mxu0 0.0
    %425 = vmatpush1.msra.mxu0 0.0
    %426 = vmatprep.subr.mxu0 0.0
    %427 = vmatpush1.msra.mxu0 0.0
    %428 = vmatprep.subr.mxu0 0.0
    %429 = vmatpush1.msra.mxu0 0.0
    %430 = vmatprep.subr.mxu0 0.0
    %431 = vmatpush1.msra.mxu0 0.0
    %432 = vmatprep.subr.mxu0 0.0
    %433 = vmatpush1.msra.mxu0 0.0
    %434 = vmatprep.subr.mxu0 0.0
    %435 = vmatpush1.msra.mxu0 0.0
    %436 = vmatprep.subr.mxu0 0.0
    %437 = vmatpush1.msra.mxu0 0.0
    %438 = vmatprep.subr.mxu0 0.0
    %439 = vmatpush1.msra.mxu0 0.0
    %440 = vmatprep.mubr.f32.mxu0 0.0
    %441 = vmatmul.mubr.f32.gmra.mrb[0].mxu0 %v63
    %v442 = vpop.f32.mrb[0].mxu0
    %v443 = vadd.f32 0.0, %v442
    %v444 = vpop.f32.mrb[0].mxu0
    %v445 = vadd.f32 0.0, %v444
    %446 = vmatprep.mubr.f32.mxu0 0.0
    %447 = vmatmul.mubr.f32.gmra.mrb[0].mxu0 %v66
    %v448 = vpop.f32.mrb[0].mxu0
    %v449 = vadd.f32 0.0, %v448
    %v450 = vpop.f32.mrb[0].mxu0
    %v451 = vadd.f32 0.0, %v450
    %452 = vdwg.mxu0
    %453 = vmatprep.subr.mxu0 %v56
    %454 = vmatpush1.msra.mxu0 %v55
    %455 = vmatprep.subr.mxu0 0.0
    %456 = vmatpush1.msra.mxu0 0.0
    %457 = vmatprep.subr.mxu0 0.0
    %458 = vmatpush1.msra.mxu0 0.0
    %459 = vmatprep.subr.mxu0 0.0
    %460 = vmatpush1.msra.mxu0 0.0
    %461 = vmatprep.subr.mxu0 0.0
    %462 = vmatpush1.msra.mxu0 0.0
    %463 = vmatprep.subr.mxu0 0.0
    %464 = vmatpush1.msra.mxu0 0.0
    %465 = vmatprep.subr.mxu0 0.0
    %466 = vmatpush1.msra.mxu0 0.0
    %467 = vmatprep.subr.mxu0 0.0
    %468 = vmatpush1.msra.mxu0 0.0
    %469 = vmatprep.subr.mxu0 0.0
    %470 = vmatpush1.msra.mxu0 0.0
    %471 = vmatprep.subr.mxu0 0.0
    %472 = vmatpush1.msra.mxu0 0.0
    %473 = vmatprep.subr.mxu0 0.0
    %474 = vmatpush1.msra.mxu0 0.0
    %475 = vmatprep.subr.mxu0 0.0
    %476 = vmatpush1.msra.mxu0 0.0
    %477 = vmatprep.subr.mxu0 0.0
    %478 = vmatpush1.msra.mxu0 0.0
    %479 = vmatprep.subr.mxu0 0.0
    %480 = vmatpush1.msra.mxu0 0.0
    %481 = vmatprep.subr.mxu0 0.0
    %482 = vmatpush1.msra.mxu0 0.0
    %483 = vmatprep.subr.mxu0 0.0
    %484 = vmatpush1.msra.mxu0 0.0
    %485 = vmatprep.subr.mxu0 0.0
    %486 = vmatpush1.msra.mxu0 0.0
    %487 = vmatprep.subr.mxu0 0.0
    %488 = vmatpush1.msra.mxu0 0.0
    %489 = vmatprep.subr.mxu0 0.0
    %490 = vmatpush1.msra.mxu0 0.0
    %491 = vmatprep.subr.mxu0 0.0
    %492 = vmatpush1.msra.mxu0 0.0
    %493 = vmatprep.subr.mxu0 0.0
    %494 = vmatpush1.msra.mxu0 0.0
    %495 = vmatprep.subr.mxu0 0.0
    %496 = vmatpush1.msra.mxu0 0.0
    %497 = vmatprep.subr.mxu0 0.0
    %498 = vmatpush1.msra.mxu0 0.0
    %499 = vmatprep.subr.mxu0 0.0
    %500 = vmatpush1.msra.mxu0 0.0
    %501 = vmatprep.subr.mxu0 0.0
    %502 = vmatpush1.msra.mxu0 0.0
    %503 = vmatprep.subr.mxu0 0.0
    %504 = vmatpush1.msra.mxu0 0.0
    %505 = vmatprep.subr.mxu0 0.0
    %506 = vmatpush1.msra.mxu0 0.0
    %507 = vmatprep.subr.mxu0 0.0
    %508 = vmatpush1.msra.mxu0 0.0
    %509 = vmatprep.subr.mxu0 0.0
    %510 = vmatpush1.msra.mxu0 0.0
    %511 = vmatprep.subr.mxu0 0.0
    %512 = vmatpush1.msra.mxu0 0.0
    %513 = vmatprep.subr.mxu0 0.0
    %514 = vmatpush1.msra.mxu0 0.0
    %515 = vmatprep.subr.mxu0 0.0
    %516 = vmatpush1.msra.mxu0 0.0
    %517 = vmatprep.mubr.f32.mxu0 0.0
    %518 = vmatmul.mubr.f32.gmra.mrb[0].mxu0 %v63
    %v519 = vpop.f32.mrb[0].mxu0
    %v520 = vadd.f32 0.0, %v519
    %v521 = vpop.f32.mrb[0].mxu0
    %v522 = vadd.f32 0.0, %v521
    %523 = vmatprep.mubr.f32.mxu0 0.0
    %524 = vmatmul.mubr.f32.gmra.mrb[0].mxu0 %v66
    %v525 = vpop.f32.mrb[0].mxu0
    %v526 = vadd.f32 0.0, %v525
    %v527 = vpop.f32.mrb[0].mxu0
    %v528 = vadd.f32 0.0, %v527
    %529 = vdwg.mxu0
    %530 = vmatprep.subr.mxu0 %v58
    %531 = vmatpush1.msra.mxu0 %v57
    %532 = vmatprep.subr.mxu0 0.0
    %533 = vmatpush1.msra.mxu0 0.0
    %534 = vmatprep.subr.mxu0 0.0
    %535 = vmatpush1.msra.mxu0 0.0
    %536 = vmatprep.subr.mxu0 0.0
    %537 = vmatpush1.msra.mxu0 0.0
    %538 = vmatprep.subr.mxu0 0.0
    %539 = vmatpush1.msra.mxu0 0.0
    %540 = vmatprep.subr.mxu0 0.0
    %541 = vmatpush1.msra.mxu0 0.0
    %542 = vmatprep.subr.mxu0 0.0
    %543 = vmatpush1.msra.mxu0 0.0
    %544 = vmatprep.subr.mxu0 0.0
    %545 = vmatpush1.msra.mxu0 0.0
    %546 = vmatprep.subr.mxu0 0.0
    %547 = vmatpush1.msra.mxu0 0.0
    %548 = vmatprep.subr.mxu0 0.0
    %549 = vmatpush1.msra.mxu0 0.0
    %550 = vmatprep.subr.mxu0 0.0
    %551 = vmatpush1.msra.mxu0 0.0
    %552 = vmatprep.subr.mxu0 0.0
    %553 = vmatpush1.msra.mxu0 0.0
    %554 = vmatprep.subr.mxu0 0.0
    %555 = vmatpush1.msra.mxu0 0.0
    %556 = vmatprep.subr.mxu0 0.0
    %557 = vmatpush1.msra.mxu0 0.0
    %558 = vmatprep.subr.mxu0 0.0
    %559 = vmatpush1.msra.mxu0 0.0
    %560 = vmatprep.subr.mxu0 0.0
    %561 = vmatpush1.msra.mxu0 0.0
    %562 = vmatprep.subr.mxu0 0.0
    %563 = vmatpush1.msra.mxu0 0.0
    %564 = vmatprep.subr.mxu0 0.0
    %565 = vmatpush1.msra.mxu0 0.0
    %566 = vmatprep.subr.mxu0 0.0
    %567 = vmatpush1.msra.mxu0 0.0
    %568 = vmatprep.subr.mxu0 0.0
    %569 = vmatpush1.msra.mxu0 0.0
    %570 = vmatprep.subr.mxu0 0.0
    %571 = vmatpush1.msra.mxu0 0.0
    %572 = vmatprep.subr.mxu0 0.0
    %573 = vmatpush1.msra.mxu0 0.0
    %574 = vmatprep.subr.mxu0 0.0
    %575 = vmatpush1.msra.mxu0 0.0
    %576 = vmatprep.subr.mxu0 0.0
    %577 = vmatpush1.msra.mxu0 0.0
    %578 = vmatprep.subr.mxu0 0.0
    %579 = vmatpush1.msra.mxu0 0.0
    %580 = vmatprep.subr.mxu0 0.0
    %581 = vmatpush1.msra.mxu0 0.0
    %582 = vmatprep.subr.mxu0 0.0
    %583 = vmatpush1.msra.mxu0 0.0
    %584 = vmatprep.subr.mxu0 0.0
    %585 = vmatpush1.msra.mxu0 0.0
    %586 = vmatprep.subr.mxu0 0.0
    %587 = vmatpush1.msra.mxu0 0.0
    %588 = vmatprep.subr.mxu0 0.0
    %589 = vmatpush1.msra.mxu0 0.0
    %590 = vmatprep.subr.mxu0 0.0
    %591 = vmatpush1.msra.mxu0 0.0
    %592 = vmatprep.subr.mxu0 0.0
    %593 = vmatpush1.msra.mxu0 0.0
    %594 = vmatprep.mubr.f32.mxu0 0.0
    %595 = vmatmul.mubr.f32.gmra.mrb[0].mxu0 %v63
    %v596 = vpop.f32.mrb[0].mxu0
    %v597 = vadd.f32 0.0, %v596
    %v598 = vpop.f32.mrb[0].mxu0
    %v599 = vadd.f32 0.0, %v598
    %600 = vmatprep.mubr.f32.mxu0 0.0
    %601 = vmatmul.mubr.f32.gmra.mrb[0].mxu0 %v66
    %v602 = vpop.f32.mrb[0].mxu0
    %v603 = vadd.f32 0.0, %v602
    %v604 = vpop.f32.mrb[0].mxu0
    %v605 = vadd.f32 0.0, %v604
    %606 = vdwg.mxu0
    %607 = vmatprep.subr.mxu0 %v60
    %608 = vmatpush1.msra.mxu0 %v59
    %609 = vmatprep.subr.mxu0 0.0
    %610 = vmatpush1.msra.mxu0 0.0
    %611 = vmatprep.subr.mxu0 0.0
    %612 = vmatpush1.msra.mxu0 0.0
    %613 = vmatprep.subr.mxu0 0.0
    %614 = vmatpush1.msra.mxu0 0.0
    %615 = vmatprep.subr.mxu0 0.0
    %616 = vmatpush1.msra.mxu0 0.0
    %617 = vmatprep.subr.mxu0 0.0
    %618 = vmatpush1.msra.mxu0 0.0
    %619 = vmatprep.subr.mxu0 0.0
    %620 = vmatpush1.msra.mxu0 0.0
    %621 = vmatprep.subr.mxu0 0.0
    %622 = vmatpush1.msra.mxu0 0.0
    %623 = vmatprep.subr.mxu0 0.0
    %624 = vmatpush1.msra.mxu0 0.0
    %625 = vmatprep.subr.mxu0 0.0
    %626 = vmatpush1.msra.mxu0 0.0
    %627 = vmatprep.subr.mxu0 0.0
    %628 = vmatpush1.msra.mxu0 0.0
    %629 = vmatprep.subr.mxu0 0.0
    %630 = vmatpush1.msra.mxu0 0.0
    %631 = vmatprep.subr.mxu0 0.0
    %632 = vmatpush1.msra.mxu0 0.0
    %633 = vmatprep.subr.mxu0 0.0
    %634 = vmatpush1.msra.mxu0 0.0
    %635 = vmatprep.subr.mxu0 0.0
    %636 = vmatpush1.msra.mxu0 0.0
    %637 = vmatprep.subr.mxu0 0.0
    %638 = vmatpush1.msra.mxu0 0.0
    %639 = vmatprep.subr.mxu0 0.0
    %640 = vmatpush1.msra.mxu0 0.0
    %641 = vmatprep.subr.mxu0 0.0
    %642 = vmatpush1.msra.mxu0 0.0
    %643 = vmatprep.subr.mxu0 0.0
    %644 = vmatpush1.msra.mxu0 0.0
    %645 = vmatprep.subr.mxu0 0.0
    %646 = vmatpush1.msra.mxu0 0.0
    %647 = vmatprep.subr.mxu0 0.0
    %648 = vmatpush1.msra.mxu0 0.0
    %649 = vmatprep.subr.mxu0 0.0
    %650 = vmatpush1.msra.mxu0 0.0
    %651 = vmatprep.subr.mxu0 0.0
    %652 = vmatpush1.msra.mxu0 0.0
    %653 = vmatprep.subr.mxu0 0.0
    %654 = vmatpush1.msra.mxu0 0.0
    %655 = vmatprep.subr.mxu0 0.0
    %656 = vmatpush1.msra.mxu0 0.0
    %657 = vmatprep.subr.mxu0 0.0
    %658 = vmatpush1.msra.mxu0 0.0
    %659 = vmatprep.subr.mxu0 0.0
    %660 = vmatpush1.msra.mxu0 0.0
    %661 = vmatprep.subr.mxu0 0.0
    %662 = vmatpush1.msra.mxu0 0.0
    %663 = vmatprep.subr.mxu0 0.0
    %664 = vmatpush1.msra.mxu0 0.0
    %665 = vmatprep.subr.mxu0 0.0
    %666 = vmatpush1.msra.mxu0 0.0
    %667 = vmatprep.subr.mxu0 0.0
    %668 = vmatpush1.msra.mxu0 0.0
    %669 = vmatprep.subr.mxu0 0.0
    %670 = vmatpush1.msra.mxu0 0.0
    %671 = vmatprep.mubr.f32.mxu0 0.0
    %672 = vmatmul.mubr.f32.gmra.mrb[0].mxu0 %v63
    %v673 = vpop.f32.mrb[0].mxu0
    %v674 = vadd.f32 0.0, %v673
    %v675 = vpop.f32.mrb[0].mxu0
    %v676 = vadd.f32 0.0, %v675
    %677 = vmatprep.mubr.f32.mxu0 0.0
    %678 = vmatmul.mubr.f32.gmra.mrb[0].mxu0 %v66
    %v679 = vpop.f32.mrb[0].mxu0
    %v680 = vadd.f32 0.0, %v679
    %v681 = vpop.f32.mrb[0].mxu0
    %v682 = vadd.f32 0.0, %v681
    %683 = vdwg.mxu0
    %v684 = vld [vmem:[%s2] sm:$0xff]
    %v685 = vld [vmem:[%s2 + $0x8] sm:$0xff]
    %v688 = vlaneseq
    %v689 = vshrl.u32 %v688, 7
    %v690 = vsub.s32 0, %v689
    %v691 = vrot.slane %v684, %v690
    %v692 = vlaneseq
    %v693 = vshrl.u32 %v692, 7
    %v694 = vsub.s32 1, %v693
    %v695 = vrot.slane %v684, %v694
    %v696 = vlaneseq
    %v697 = vshrl.u32 %v696, 7
    %v698 = vsub.s32 2, %v697
    %v699 = vrot.slane %v684, %v698
    %v700 = vlaneseq
    %v701 = vshrl.u32 %v700, 7
    %v702 = vsub.s32 3, %v701
    %v703 = vrot.slane %v684, %v702
    %v704 = vlaneseq
    %v705 = vshrl.u32 %v704, 7
    %v706 = vsub.s32 4, %v705
    %v707 = vrot.slane %v684, %v706
    %v708 = vlaneseq
    %v709 = vshrl.u32 %v708, 7
    %v710 = vsub.s32 5, %v709
    %v711 = vrot.slane %v684, %v710
    %v712 = vlaneseq
    %v713 = vshrl.u32 %v712, 7
    %v714 = vsub.s32 6, %v713
    %v715 = vrot.slane %v684, %v714
    %v716 = vlaneseq
    %v717 = vshrl.u32 %v716, 7
    %v718 = vsub.s32 7, %v717
    %v719 = vrot.slane %v684, %v718
    %v720 = vlaneseq
    %v721 = vshrl.u32 %v720, 7
    %v722 = vsub.s32 0, %v721
    %v723 = vrot.slane %v685, %v722
    %v724 = vlaneseq
    %v725 = vshrl.u32 %v724, 7
    %v726 = vsub.s32 1, %v725
    %v727 = vrot.slane %v685, %v726
    %v728 = vlaneseq
    %v729 = vshrl.u32 %v728, 7
    %v730 = vsub.s32 2, %v729
    %v731 = vrot.slane %v685, %v730
    %v732 = vlaneseq
    %v733 = vshrl.u32 %v732, 7
    %v734 = vsub.s32 3, %v733
    %v735 = vrot.slane %v685, %v734
    %v736 = vlaneseq
    %v737 = vshrl.u32 %v736, 7
    %v738 = vsub.s32 4, %v737
    %v739 = vrot.slane %v685, %v738
    %v740 = vlaneseq
    %v741 = vshrl.u32 %v740, 7
    %v742 = vsub.s32 5, %v741
    %v743 = vrot.slane %v685, %v742
    %v744 = vlaneseq
    %v745 = vshrl.u32 %v744, 7
    %v746 = vsub.s32 6, %v745
    %v747 = vrot.slane %v685, %v746
    %v748 = vlaneseq
    %v749 = vshrl.u32 %v748, 7
    %v750 = vsub.s32 7, %v749
    %v751 = vrot.slane %v685, %v750
    %vm768 = vcmp.gt.f32.partialorder %v135, %v691
    %vm769 = vcmp.gt.f32.partialorder %v137, %v695
    %vm770 = vcmp.gt.f32.partialorder %v212, %v699
    %vm771 = vcmp.gt.f32.partialorder %v214, %v703
    %vm772 = vcmp.gt.f32.partialorder %v289, %v707
    %vm773 = vcmp.gt.f32.partialorder %v291, %v711
    %vm774 = vcmp.gt.f32.partialorder %v366, %v715
    %vm775 = vcmp.gt.f32.partialorder %v368, %v719
    %vm776 = vcmp.gt.f32.partialorder %v443, %v723
    %vm777 = vcmp.gt.f32.partialorder %v445, %v727
    %vm778 = vcmp.gt.f32.partialorder %v520, %v731
    %vm779 = vcmp.gt.f32.partialorder %v522, %v735
    %vm780 = vcmp.gt.f32.partialorder %v597, %v739
    %vm781 = vcmp.gt.f32.partialorder %v599, %v743
    %vm782 = vcmp.gt.f32.partialorder %v674, %v747
    %vm783 = vcmp.gt.f32.partialorder %v676, %v751
    %vm784 = vcmp.gt.f32.partialorder %v141, %v691
    %vm785 = vcmp.gt.f32.partialorder %v143, %v695
    %vm786 = vcmp.gt.f32.partialorder %v218, %v699
    %vm787 = vcmp.gt.f32.partialorder %v220, %v703
    %vm788 = vcmp.gt.f32.partialorder %v295, %v707
    %vm789 = vcmp.gt.f32.partialorder %v297, %v711
    %vm790 = vcmp.gt.f32.partialorder %v372, %v715
    %vm791 = vcmp.gt.f32.partialorder %v374, %v719
    %vm792 = vcmp.gt.f32.partialorder %v449, %v723
    %vm793 = vcmp.gt.f32.partialorder %v451, %v727
    %vm794 = vcmp.gt.f32.partialorder %v526, %v731
    %vm795 = vcmp.gt.f32.partialorder %v528, %v735
    %vm796 = vcmp.gt.f32.partialorder %v603, %v739
    %vm797 = vcmp.gt.f32.partialorder %v605, %v743
    %vm798 = vcmp.gt.f32.partialorder %v680, %v747
    %vm799 = vcmp.gt.f32.partialorder %v682, %v751
    %v800 = vld [vmem:[#allocation4] sm:$0xff]
    %v801 = vld [vmem:[#allocation4 + $0x8] sm:$0xff]
    %v802 = vld [vmem:[#allocation4 + $0x20] sm:$0xff]
    %v803 = vld [vmem:[#allocation4 + $0x28] sm:$0xff]
    %v804 = vlaneseq
    %v805 = vshrl.u32 %v804, 7
    %v806 = vsub.s32 1, %v805
    %v807 = vrot.slane %v800, %v806
    %v808 = vlaneseq
    %v809 = vshrl.u32 %v808, 7
    %v810 = vsub.s32 1, %v809
    %v811 = vrot.slane %v801, %v810
    %v812 = vlaneseq
    %v813 = vshrl.u32 %v812, 7
    %v814 = vsub.s32 0, %v813
    %v815 = vrot.slane %v800, %v814
    %v816 = vlaneseq
    %v817 = vshrl.u32 %v816, 7
    %v818 = vsub.s32 0, %v817
    %v819 = vrot.slane %v801, %v818
    %v820 = vsel %vm768, %v807, %v815
    %v821 = vsel %vm769, %v811, %v819
    %v822 = vsel %vm784, %v807, %v815
    %v823 = vsel %vm785, %v811, %v819
    %v824 = vlaneseq
    %v825 = vshrl.u32 %v824, 7
    %v826 = vsub.s32 3, %v825
    %v827 = vrot.slane %v800, %v826
    %v828 = vlaneseq
    %v829 = vshrl.u32 %v828, 7
    %v830 = vsub.s32 3, %v829
    %v831 = vrot.slane %v801, %v830
    %v832 = vlaneseq
    %v833 = vshrl.u32 %v832, 7
    %v834 = vsub.s32 2, %v833
    %v835 = vrot.slane %v800, %v834
    %v836 = vlaneseq
    %v837 = vshrl.u32 %v836, 7
    %v838 = vsub.s32 2, %v837
    %v839 = vrot.slane %v801, %v838
    %v840 = vsel %vm768, %v827, %v835
    %v841 = vsel %vm769, %v831, %v839
    %v842 = vsel %vm784, %v827, %v835
    %v843 = vsel %vm785, %v831, %v839
    %v844 = vsel %vm772, %v840, %v820
    %v845 = vsel %vm773, %v841, %v821
    %v846 = vsel %vm788, %v842, %v822
    %v847 = vsel %vm789, %v843, %v823
    %v848 = vlaneseq
    %v849 = vshrl.u32 %v848, 7
    %v850 = vsub.s32 5, %v849
    %v851 = vrot.slane %v800, %v850
    %v852 = vlaneseq
    %v853 = vshrl.u32 %v852, 7
    %v854 = vsub.s32 5, %v853
    %v855 = vrot.slane %v801, %v854
    %v856 = vlaneseq
    %v857 = vshrl.u32 %v856, 7
    %v858 = vsub.s32 4, %v857
    %v859 = vrot.slane %v800, %v858
    %v860 = vlaneseq
    %v861 = vshrl.u32 %v860, 7
    %v862 = vsub.s32 4, %v861
    %v863 = vrot.slane %v801, %v862
    %v864 = vsel %vm768, %v851, %v859
    %v865 = vsel %vm769, %v855, %v863
    %v866 = vsel %vm784, %v851, %v859
    %v867 = vsel %vm785, %v855, %v863
    %v868 = vlaneseq
    %v869 = vshrl.u32 %v868, 7
    %v870 = vsub.s32 7, %v869
    %v871 = vrot.slane %v800, %v870
    %v872 = vlaneseq
    %v873 = vshrl.u32 %v872, 7
    %v874 = vsub.s32 7, %v873
    %v875 = vrot.slane %v801, %v874
    %v876 = vlaneseq
    %v877 = vshrl.u32 %v876, 7
    %v878 = vsub.s32 6, %v877
    %v879 = vrot.slane %v800, %v878
    %v880 = vlaneseq
    %v881 = vshrl.u32 %v880, 7
    %v882 = vsub.s32 6, %v881
    %v883 = vrot.slane %v801, %v882
    %v884 = vsel %vm768, %v871, %v879
    %v885 = vsel %vm769, %v875, %v883
    %v886 = vsel %vm784, %v871, %v879
    %v887 = vsel %vm785, %v875, %v883
    %v888 = vsel %vm772, %v884, %v864
    %v889 = vsel %vm773, %v885, %v865
    %v890 = vsel %vm788, %v886, %v866
    %v891 = vsel %vm789, %v887, %v867
    %v892 = vsel %vm776, %v888, %v844
    %v893 = vsel %vm777, %v889, %v845
    %v894 = vsel %vm792, %v890, %v846
    %v895 = vsel %vm793, %v891, %v847
    %v896 = vlaneseq
    %v897 = vshrl.u32 %v896, 7
    %v898 = vsub.s32 1, %v897
    %v899 = vrot.slane %v802, %v898
    %v900 = vlaneseq
    %v901 = vshrl.u32 %v900, 7
    %v902 = vsub.s32 1, %v901
    %v903 = vrot.slane %v803, %v902
    %v904 = vlaneseq
    %v905 = vshrl.u32 %v904, 7
    %v906 = vsub.s32 0, %v905
    %v907 = vrot.slane %v802, %v906
    %v908 = vlaneseq
    %v909 = vshrl.u32 %v908, 7
    %v910 = vsub.s32 0, %v909
    %v911 = vrot.slane %v803, %v910
    %v912 = vsel %vm768, %v899, %v907
    %v913 = vsel %vm769, %v903, %v911
    %v914 = vsel %vm784, %v899, %v907
    %v915 = vsel %vm785, %v903, %v911
    %v916 = vlaneseq
    %v917 = vshrl.u32 %v916, 7
    %v918 = vsub.s32 3, %v917
    %v919 = vrot.slane %v802, %v918
    %v920 = vlaneseq
    %v921 = vshrl.u32 %v920, 7
    %v922 = vsub.s32 3, %v921
    %v923 = vrot.slane %v803, %v922
    %v924 = vlaneseq
    %v925 = vshrl.u32 %v924, 7
    %v926 = vsub.s32 2, %v925
    %v927 = vrot.slane %v802, %v926
    %v928 = vlaneseq
    %v929 = vshrl.u32 %v928, 7
    %v930 = vsub.s32 2, %v929
    %v931 = vrot.slane %v803, %v930
    %v932 = vsel %vm768, %v919, %v927
    %v933 = vsel %vm769, %v923, %v931
    %v934 = vsel %vm784, %v919, %v927
    %v935 = vsel %vm785, %v923, %v931
    %v936 = vsel %vm772, %v932, %v912
    %v937 = vsel %vm773, %v933, %v913
    %v938 = vsel %vm788, %v934, %v914
    %v939 = vsel %vm789, %v935, %v915
    %v940 = vlaneseq
    %v941 = vshrl.u32 %v940, 7
    %v942 = vsub.s32 5, %v941
    %v943 = vrot.slane %v802, %v942
    %v944 = vlaneseq
    %v945 = vshrl.u32 %v944, 7
    %v946 = vsub.s32 5, %v945
    %v947 = vrot.slane %v803, %v946
    %v948 = vlaneseq
    %v949 = vshrl.u32 %v948, 7
    %v950 = vsub.s32 4, %v949
    %v951 = vrot.slane %v802, %v950
    %v952 = vlaneseq
    %v953 = vshrl.u32 %v952, 7
    %v954 = vsub.s32 4, %v953
    %v955 = vrot.slane %v803, %v954
    %v956 = vsel %vm768, %v943, %v951
    %v957 = vsel %vm769, %v947, %v955
    %v958 = vsel %vm784, %v943, %v951
    %v959 = vsel %vm785, %v947, %v955
    %v960 = vlaneseq
    %v961 = vshrl.u32 %v960, 7
    %v962 = vsub.s32 7, %v961
    %v963 = vrot.slane %v802, %v962
    %v964 = vlaneseq
    %v965 = vshrl.u32 %v964, 7
    %v966 = vsub.s32 7, %v965
    %v967 = vrot.slane %v803, %v966
    %v968 = vlaneseq
    %v969 = vshrl.u32 %v968, 7
    %v970 = vsub.s32 6, %v969
    %v971 = vrot.slane %v802, %v970
    %v972 = vlaneseq
    %v973 = vshrl.u32 %v972, 7
    %v974 = vsub.s32 6, %v973
    %v975 = vrot.slane %v803, %v974
    %v976 = vsel %vm768, %v963, %v971
    %v977 = vsel %vm769, %v967, %v975
    %v978 = vsel %vm784, %v963, %v971
    %v979 = vsel %vm785, %v967, %v975
    %v980 = vsel %vm772, %v976, %v956
    %v981 = vsel %vm773, %v977, %v957
    %v982 = vsel %vm788, %v978, %v958
    %v983 = vsel %vm789, %v979, %v959
    %v984 = vsel %vm776, %v980, %v936
    %v985 = vsel %vm777, %v981, %v937
    %v986 = vsel %vm792, %v982, %v938
    %v987 = vsel %vm793, %v983, %v939
    %v988 = vsel %vm780, %v984, %v892
    %v989 = vsel %vm781, %v985, %v893
    %v990 = vsel %vm796, %v986, %v894
    %v991 = vsel %vm797, %v987, %v895
    %v992 = vadd.f32 %v988, %v989
    %993 = vadd.xlane.f32.xlu0 %v992
    %v994 = vpop.xlane.xlu0 %993
    %v995 = vadd.f32 %v990, %v991
    %996 = vadd.xlane.f32.xlu0 %v995
    %v997 = vpop.xlane.xlu0 %996
    %v998 = vadd.f32 %v994, 0.0
    %v999 = vadd.f32 %v997, 0.0
    %v1000 = vld [vmem:[#allocation4 + $0x10] sm:$0xff]
    %v1001 = vld [vmem:[#allocation4 + $0x18] sm:$0xff]
    %v1002 = vld [vmem:[#allocation4 + $0x30] sm:$0xff]
    %v1003 = vld [vmem:[#allocation4 + $0x38] sm:$0xff]
    %v1004 = vlaneseq
    %v1005 = vshrl.u32 %v1004, 7
    %v1006 = vsub.s32 1, %v1005
    %v1007 = vrot.slane %v1000, %v1006
    %v1008 = vlaneseq
    %v1009 = vshrl.u32 %v1008, 7
    %v1010 = vsub.s32 1, %v1009
    %v1011 = vrot.slane %v1001, %v1010
    %v1012 = vlaneseq
    %v1013 = vshrl.u32 %v1012, 7
    %v1014 = vsub.s32 0, %v1013
    %v1015 = vrot.slane %v1000, %v1014
    %v1016 = vlaneseq
    %v1017 = vshrl.u32 %v1016, 7
    %v1018 = vsub.s32 0, %v1017
    %v1019 = vrot.slane %v1001, %v1018
    %v1020 = vsel %vm770, %v1007, %v1015
    %v1021 = vsel %vm771, %v1011, %v1019
    %v1022 = vsel %vm786, %v1007, %v1015
    %v1023 = vsel %vm787, %v1011, %v1019
    %v1024 = vlaneseq
    %v1025 = vshrl.u32 %v1024, 7
    %v1026 = vsub.s32 3, %v1025
    %v1027 = vrot.slane %v1000, %v1026
    %v1028 = vlaneseq
    %v1029 = vshrl.u32 %v1028, 7
    %v1030 = vsub.s32 3, %v1029
    %v1031 = vrot.slane %v1001, %v1030
    %v1032 = vlaneseq
    %v1033 = vshrl.u32 %v1032, 7
    %v1034 = vsub.s32 2, %v1033
    %v1035 = vrot.slane %v1000, %v1034
    %v1036 = vlaneseq
    %v1037 = vshrl.u32 %v1036, 7
    %v1038 = vsub.s32 2, %v1037
    %v1039 = vrot.slane %v1001, %v1038
    %v1040 = vsel %vm770, %v1027, %v1035
    %v1041 = vsel %vm771, %v1031, %v1039
    %v1042 = vsel %vm786, %v1027, %v1035
    %v1043 = vsel %vm787, %v1031, %v1039
    %v1044 = vsel %vm774, %v1040, %v1020
    %v1045 = vsel %vm775, %v1041, %v1021
    %v1046 = vsel %vm790, %v1042, %v1022
    %v1047 = vsel %vm791, %v1043, %v1023
    %v1048 = vlaneseq
    %v1049 = vshrl.u32 %v1048, 7
    %v1050 = vsub.s32 5, %v1049
    %v1051 = vrot.slane %v1000, %v1050
    %v1052 = vlaneseq
    %v1053 = vshrl.u32 %v1052, 7
    %v1054 = vsub.s32 5, %v1053
    %v1055 = vrot.slane %v1001, %v1054
    %v1056 = vlaneseq
    %v1057 = vshrl.u32 %v1056, 7
    %v1058 = vsub.s32 4, %v1057
    %v1059 = vrot.slane %v1000, %v1058
    %v1060 = vlaneseq
    %v1061 = vshrl.u32 %v1060, 7
    %v1062 = vsub.s32 4, %v1061
    %v1063 = vrot.slane %v1001, %v1062
    %v1064 = vsel %vm770, %v1051, %v1059
    %v1065 = vsel %vm771, %v1055, %v1063
    %v1066 = vsel %vm786, %v1051, %v1059
    %v1067 = vsel %vm787, %v1055, %v1063
    %v1068 = vlaneseq
    %v1069 = vshrl.u32 %v1068, 7
    %v1070 = vsub.s32 7, %v1069
    %v1071 = vrot.slane %v1000, %v1070
    %v1072 = vlaneseq
    %v1073 = vshrl.u32 %v1072, 7
    %v1074 = vsub.s32 7, %v1073
    %v1075 = vrot.slane %v1001, %v1074
    %v1076 = vlaneseq
    %v1077 = vshrl.u32 %v1076, 7
    %v1078 = vsub.s32 6, %v1077
    %v1079 = vrot.slane %v1000, %v1078
    %v1080 = vlaneseq
    %v1081 = vshrl.u32 %v1080, 7
    %v1082 = vsub.s32 6, %v1081
    %v1083 = vrot.slane %v1001, %v1082
    %v1084 = vsel %vm770, %v1071, %v1079
    %v1085 = vsel %vm771, %v1075, %v1083
    %v1086 = vsel %vm786, %v1071, %v1079
    %v1087 = vsel %vm787, %v1075, %v1083
    %v1088 = vsel %vm774, %v1084, %v1064
    %v1089 = vsel %vm775, %v1085, %v1065
    %v1090 = vsel %vm790, %v1086, %v1066
    %v1091 = vsel %vm791, %v1087, %v1067
    %v1092 = vsel %vm778, %v1088, %v1044
    %v1093 = vsel %vm779, %v1089, %v1045
    %v1094 = vsel %vm794, %v1090, %v1046
    %v1095 = vsel %vm795, %v1091, %v1047
    %v1096 = vlaneseq
    %v1097 = vshrl.u32 %v1096, 7
    %v1098 = vsub.s32 1, %v1097
    %v1099 = vrot.slane %v1002, %v1098
    %v1100 = vlaneseq
    %v1101 = vshrl.u32 %v1100, 7
    %v1102 = vsub.s32 1, %v1101
    %v1103 = vrot.slane %v1003, %v1102
    %v1104 = vlaneseq
    %v1105 = vshrl.u32 %v1104, 7
    %v1106 = vsub.s32 0, %v1105
    %v1107 = vrot.slane %v1002, %v1106
    %v1108 = vlaneseq
    %v1109 = vshrl.u32 %v1108, 7
    %v1110 = vsub.s32 0, %v1109
    %v1111 = vrot.slane %v1003, %v1110
    %v1112 = vsel %vm770, %v1099, %v1107
    %v1113 = vsel %vm771, %v1103, %v1111
    %v1114 = vsel %vm786, %v1099, %v1107
    %v1115 = vsel %vm787, %v1103, %v1111
    %v1116 = vlaneseq
    %v1117 = vshrl.u32 %v1116, 7
    %v1118 = vsub.s32 3, %v1117
    %v1119 = vrot.slane %v1002, %v1118
    %v1120 = vlaneseq
    %v1121 = vshrl.u32 %v1120, 7
    %v1122 = vsub.s32 3, %v1121
    %v1123 = vrot.slane %v1003, %v1122
    %v1124 = vlaneseq
    %v1125 = vshrl.u32 %v1124, 7
    %v1126 = vsub.s32 2, %v1125
    %v1127 = vrot.slane %v1002, %v1126
    %v1128 = vlaneseq
    %v1129 = vshrl.u32 %v1128, 7
    %v1130 = vsub.s32 2, %v1129
    %v1131 = vrot.slane %v1003, %v1130
    %v1132 = vsel %vm770, %v1119, %v1127
    %v1133 = vsel %vm771, %v1123, %v1131
    %v1134 = vsel %vm786, %v1119, %v1127
    %v1135 = vsel %vm787, %v1123, %v1131
    %v1136 = vsel %vm774, %v1132, %v1112
    %v1137 = vsel %vm775, %v1133, %v1113
    %v1138 = vsel %vm790, %v1134, %v1114
    %v1139 = vsel %vm791, %v1135, %v1115
    %v1140 = vlaneseq
    %v1141 = vshrl.u32 %v1140, 7
    %v1142 = vsub.s32 5, %v1141
    %v1143 = vrot.slane %v1002, %v1142
    %v1144 = vlaneseq
    %v1145 = vshrl.u32 %v1144, 7
    %v1146 = vsub.s32 5, %v1145
    %v1147 = vrot.slane %v1003, %v1146
    %v1148 = vlaneseq
    %v1149 = vshrl.u32 %v1148, 7
    %v1150 = vsub.s32 4, %v1149
    %v1151 = vrot.slane %v1002, %v1150
    %v1152 = vlaneseq
    %v1153 = vshrl.u32 %v1152, 7
    %v1154 = vsub.s32 4, %v1153
    %v1155 = vrot.slane %v1003, %v1154
    %v1156 = vsel %vm770, %v1143, %v1151
    %v1157 = vsel %vm771, %v1147, %v1155
    %v1158 = vsel %vm786, %v1143, %v1151
    %v1159 = vsel %vm787, %v1147, %v1155
    %v1160 = vlaneseq
    %v1161 = vshrl.u32 %v1160, 7
    %v1162 = vsub.s32 7, %v1161
    %v1163 = vrot.slane %v1002, %v1162
    %v1164 = vlaneseq
    %v1165 = vshrl.u32 %v1164, 7
    %v1166 = vsub.s32 7, %v1165
    %v1167 = vrot.slane %v1003, %v1166
    %v1168 = vlaneseq
    %v1169 = vshrl.u32 %v1168, 7
    %v1170 = vsub.s32 6, %v1169
    %v1171 = vrot.slane %v1002, %v1170
    %v1172 = vlaneseq
    %v1173 = vshrl.u32 %v1172, 7
    %v1174 = vsub.s32 6, %v1173
    %v1175 = vrot.slane %v1003, %v1174
    %v1176 = vsel %vm770, %v1163, %v1171
    %v1177 = vsel %vm771, %v1167, %v1175
    %v1178 = vsel %vm786, %v1163, %v1171
    %v1179 = vsel %vm787, %v1167, %v1175
    %v1180 = vsel %vm774, %v1176, %v1156
    %v1181 = vsel %vm775, %v1177, %v1157
    %v1182 = vsel %vm790, %v1178, %v1158
    %v1183 = vsel %vm791, %v1179, %v1159
    %v1184 = vsel %vm778, %v1180, %v1136
    %v1185 = vsel %vm779, %v1181, %v1137
    %v1186 = vsel %vm794, %v1182, %v1138
    %v1187 = vsel %vm795, %v1183, %v1139
    %v1188 = vsel %vm782, %v1184, %v1092
    %v1189 = vsel %vm783, %v1185, %v1093
    %v1190 = vsel %vm798, %v1186, %v1094
    %v1191 = vsel %vm799, %v1187, %v1095
    %v1192 = vadd.f32 %v1188, %v1189
    %1193 = vadd.xlane.f32.xlu0 %v1192
    %v1194 = vpop.xlane.xlu0 %1193
    %v1195 = vadd.f32 %v1190, %v1191
    %1196 = vadd.xlane.f32.xlu0 %v1195
    %v1197 = vpop.xlane.xlu0 %1196
    %v1198 = vadd.f32 %v998, %v1194
    %v1199 = vadd.f32 %v999, %v1197
    %v1200 = vmul.f32 %v1198, 0.001953125
    %v1201 = vmul.f32 %v1199, 0.001953125
    %vm1202 = vcmask 7168
    %1203 = vst.msk [vmem:[%s4] sm:$0xff] %vm1202, %v1200
    %1204 = vst.msk [vmem:[%s4 + $0x8] sm:$0xff] %vm1202, %v1201
    // Predicated region
    $region26: #{rf_forest_predict.1} parent=1 // pred_check
      _
    $region27: #{rf_forest_predict.1} parent=1 // pred_check_branch
      %1206 = sbr.rel (0) target = $region29
    $region28: #{rf_forest_predict.1} parent=1 // pred_region
      _
    $region29: #{rf_forest_predict.1} parent=1 // pred_fallthru
      _
    // Predicated region
    $region30: #{rf_forest_predict.1} parent=1 // pred_check
      _
    $region31: #{rf_forest_predict.1} parent=1 // pred_check_branch
      %1208 = sbr.rel (0) target = $region33
    $region32: #{rf_forest_predict.1} parent=1 // pred_region
      _
    $region33: #{rf_forest_predict.1} parent=1 // pred_fallthru
      _
    %1209 = vsyncpa [#allocation3], 1
    %1210 = vsyncpa [#allocation5], 1

</llo_original>
